<compile_context>
chip_gen: v6e
topology: v6e:2x2x1
jax: 0.10.0
libtpu: 0.0.40
codegen_flags: <defaults>
</compile_context>

<pallas_src>
import jax
import jax.numpy as jnp
from jax.experimental import pallas as pl
from jax.experimental.pallas import tpu as pltpu


_PACK = 12  # original rows packed per lane-major row (12 * 10 = 120 lanes)


def _nested_net3_kernel(xx1_ref, xx2_ref, x2_ref, x3_ref, w_ref, s_ref, b_ref,
                        o_ref):
    """One batch tile of the fused 3-Linear forward.

    xx*_ref / x*_ref : (tm, 120) packed activations (12 original rows / row).
    w_ref            : (3, 120) lane-tiled weight rows (resident across grid).
    s_ref            : (120, 12) block-diagonal segment-sum selector (resident).
    b_ref            : (1, 1) folded bias scalar in SMEM.
    o_ref            : (tm, 12) per-packed-row outputs.
    """
    w = w_ref[...]
    acc = (xx1_ref[...] + xx2_ref[...]) * w[0:1, :]        # VPU FMA
    acc = acc + x2_ref[...] * w[1:2, :]                    # VPU FMA
    acc = acc + x3_ref[...] * w[2:3, :]                    # VPU FMA
    # Per-group-of-10 lane reduction on the (otherwise idle) MXU: one matmul
    # per tile instead of one XLU lane-reduce per 8 rows.
    prec = jax.lax.Precision.HIGHEST if acc.dtype == jnp.float32 else None
    y = jnp.dot(acc, s_ref[...], precision=prec,
                preferred_element_type=jnp.float32)
    o_ref[...] = (y + b_ref[0, 0]).astype(o_ref.dtype)


def nested_input_net3(x1, x2, x3, params, *, tile_rows=2048):
    """Fused NestedInputNet3 forward.

    x1 is a tuple (xx1, xx2); each of xx1, xx2, x2, x3 is (B, F=10), f32 or
    bf16 (kept in whatever dtype the caller provides).
    params are torch-style per-layer ((w (F,1), b (1,1)) x 3), folded in the
    wrapper into one lane-tiled weight array, one selector, one bias scalar.
    tile_rows: packed rows (of 12 original rows each) per grid step.
    """
    xx1, xx2 = x1
    B, F = xx1.shape
    dtype = xx1.dtype
    lanes = F * _PACK  # 120

    (w1, b1), (w2, b2), (w3, b3) = params

    # Lane-tiled weights: one resident (3, 120) array, tile hoisted out of the
    # kernel so no per-use broadcast re-materialization.
    w_rows = jnp.stack([
        jnp.tile(w1.reshape(F), _PACK),
        jnp.tile(w2.reshape(F), _PACK),
        jnp.tile(w3.reshape(F), _PACK),
    ]).astype(dtype)
    # Block-diagonal selector: column g sums lanes g*F .. g*F+F-1.
    sel = jnp.repeat(jnp.eye(_PACK, dtype=dtype), F, axis=0)       # (120, 12)
    # Fold the three biases into one SMEM scalar (summation-order change is
    # well within f32 tolerance).
    b_total = (b1 + b2 + b3).reshape(1, 1).astype(jnp.float32)

    # ---- batch padding + free row-major repack to 120 dense lanes ----------
    R = -(-B // _PACK)                       # packed rows needed
    if R <= tile_rows:
        tm = R                               # single full-extent block
        Rp = R
    else:
        tm = tile_rows
        assert tm % 8 == 0, "tile_rows must be a multiple of 8 (sublane tiling)"
        Rp = -(-R // tm) * tm
    Bp = Rp * _PACK

    def _pack(a):
        if Bp != B:
            a = jnp.pad(a, ((0, Bp - B), (0, 0)))
        return a.reshape(Rp, lanes)          # contiguous row-major repack

    xx1p, xx2p, x2p, x3p = map(_pack, (xx1, xx2, x2, x3))

    act_spec = pl.BlockSpec((tm, lanes), lambda i: (i, 0))
    w_spec = pl.BlockSpec((3, lanes), lambda i: (0, 0))            # resident
    s_spec = pl.BlockSpec((lanes, _PACK), lambda i: (0, 0))        # resident
    b_spec = pl.BlockSpec(memory_space=pltpu.MemorySpace.SMEM)
    out_spec = pl.BlockSpec((tm, _PACK), lambda i: (i, 0))

    y = pl.pallas_call(
        _nested_net3_kernel,
        out_shape=jax.ShapeDtypeStruct((Rp, _PACK), dtype),
        grid=(Rp // tm,),
        in_specs=[act_spec, act_spec, act_spec, act_spec, w_spec, s_spec,
                  b_spec],
        out_specs=out_spec,
        compiler_params=pltpu.CompilerParams(
            dimension_semantics=("parallel",),   # shard batch across TCs
            vmem_limit_bytes=32 * 1024 * 1024,   # ~11 MiB used at default tile
        ),
    )(xx1p, xx2p, x2p, x3p, w_rows, sel, b_total)

    # (Rp, 12) -> (Bp, 1): packed row r, column g is original row 12*r + g.
    y = y.reshape(Bp, 1)
    return y if Bp == B else y[:B]


def init_params(key, in_features=10, out_features=1):
    """Deterministic Linear params, torch-style layout ((in,out), (1,out))."""
    keys = jax.random.split(key, 6)
    bound = 1.0 / jnp.sqrt(in_features)
    params = []
    for i in range(3):
        w = jax.random.uniform(keys[2 * i], (in_features, out_features),
                               jnp.float32, -bound, bound)
        b = jax.random.uniform(keys[2 * i + 1], (1, out_features),
                               jnp.float32, -bound, bound)
        params.append((w, b))
    return tuple(params)


def reference(x1, x2, x3, params):
    xx1, xx2 = x1
    (w1, b1), (w2, b2), (w3, b3) = params
    return (xx1 + xx2) @ w1 + b1 + x2 @ w2 + b2 + x3 @ w3 + b3


if __name__ == "__main__":
    key = jax.random.PRNGKey(0)
    kp = jax.random.fold_in(key, 777)

    F = 10
    params = init_params(kp, F, 1)

    # Two small configs:
    #   B=8   -> 1 packed row, single full-extent block path.
    #   B=300 -> 25 packed rows, tile_rows=8 -> padding + 4-step grid path.
    for B, tile_rows in ((8, 2048), (300, 8)):
        k1, k2, k3, k4 = jax.random.split(jax.random.fold_in(key, B), 4)
        xx1 = jax.random.normal(k1, (B, F), jnp.float32)
        xx2 = jax.random.normal(k2, (B, F), jnp.float32)
        x2 = jax.random.normal(k3, (B, F), jnp.float32)
        x3 = jax.random.normal(k4, (B, F), jnp.float32)

        out = nested_input_net3((xx1, xx2), x2, x3, params,
                                tile_rows=tile_rows)
        out = jax.block_until_ready(out)

        ref = reference((xx1, xx2), x2, x3, params)
        assert out.shape == (B, 1), f"bad shape {out.shape} for B={B}"
        assert jnp.allclose(out, ref, atol=1e-5, rtol=1e-5), \
            f"mismatch vs reference at B={B}"

    print("KERNEL_OK")
</pallas_src>

<mosaic_0001>
module attributes {stable_mosaic.version = 11 : i64} {
  func.func @_nested_net3_kernel(%arg0: i32, %arg1: memref<1x120xf32, #tpu.memory_space<vmem>>, %arg2: memref<1x120xf32, #tpu.memory_space<vmem>>, %arg3: memref<1x120xf32, #tpu.memory_space<vmem>>, %arg4: memref<1x120xf32, #tpu.memory_space<vmem>>, %arg5: memref<3x120xf32, #tpu.memory_space<vmem>>, %arg6: memref<120x12xf32, #tpu.memory_space<vmem>>, %arg7: memref<1x1xf32, #tpu.memory_space<smem>>, %arg8: memref<1x12xf32, #tpu.memory_space<vmem>>) attributes {dimension_semantics = [#tpu.dimension_semantics<parallel>], iteration_bounds = array<i64: 1>, scalar_prefetch = 0 : i64, scratch_operands = 0 : i64, tpu.core_type = #tpu.core_type<tc>, window_params = [{transform_indices = @transform_0, window_bounds = array<i64: 1, 120>}, {transform_indices = @transform_1, window_bounds = array<i64: 1, 120>}, {transform_indices = @transform_2, window_bounds = array<i64: 1, 120>}, {transform_indices = @transform_3, window_bounds = array<i64: 1, 120>}, {pipeline_mode = #tpu.pipeline_mode<synchronous>, transform_indices = @transform_4, window_bounds = array<i64: 3, 120>}, {pipeline_mode = #tpu.pipeline_mode<synchronous>, transform_indices = @transform_5, window_bounds = array<i64: 120, 12>}, {transform_indices = @transform_6, window_bounds = array<i64: 1, 1>}, {transform_indices = @transform_7, window_bounds = array<i64: 1, 12>}]} {
    %c0 = arith.constant 0 : index
    %c0_0 = arith.constant 0 : index
    %0 = vector.load %arg5[%c0, %c0_0] : memref<3x120xf32, #tpu.memory_space<vmem>>, vector<3x120xf32>
    %c0_1 = arith.constant 0 : index
    %c0_2 = arith.constant 0 : index
    %1 = vector.load %arg1[%c0_1, %c0_2] : memref<1x120xf32, #tpu.memory_space<vmem>>, vector<1x120xf32>
    %c0_3 = arith.constant 0 : index
    %c0_4 = arith.constant 0 : index
    %2 = vector.load %arg2[%c0_3, %c0_4] : memref<1x120xf32, #tpu.memory_space<vmem>>, vector<1x120xf32>
    %3 = arith.addf %1, %2 : vector<1x120xf32>
    %4 = vector.extract_strided_slice %0 {offsets = [0, 0], sizes = [1, 120], strides = [1, 1]} : vector<3x120xf32> to vector<1x120xf32>
    %5 = arith.mulf %3, %4 : vector<1x120xf32>
    %c0_5 = arith.constant 0 : index
    %c0_6 = arith.constant 0 : index
    %6 = vector.load %arg3[%c0_5, %c0_6] : memref<1x120xf32, #tpu.memory_space<vmem>>, vector<1x120xf32>
    %7 = vector.extract_strided_slice %0 {offsets = [1, 0], sizes = [1, 120], strides = [1, 1]} : vector<3x120xf32> to vector<1x120xf32>
    %8 = arith.mulf %6, %7 : vector<1x120xf32>
    %9 = arith.addf %5, %8 : vector<1x120xf32>
    %c0_7 = arith.constant 0 : index
    %c0_8 = arith.constant 0 : index
    %10 = vector.load %arg4[%c0_7, %c0_8] : memref<1x120xf32, #tpu.memory_space<vmem>>, vector<1x120xf32>
    %11 = vector.extract_strided_slice %0 {offsets = [2, 0], sizes = [1, 120], strides = [1, 1]} : vector<3x120xf32> to vector<1x120xf32>
    %12 = arith.mulf %10, %11 : vector<1x120xf32>
    %13 = arith.addf %9, %12 : vector<1x120xf32>
    %c0_9 = arith.constant 0 : index
    %c0_10 = arith.constant 0 : index
    %14 = vector.load %arg6[%c0_9, %c0_10] : memref<120x12xf32, #tpu.memory_space<vmem>>, vector<120x12xf32>
    %cst = arith.constant dense<0.000000e+00> : vector<1x12xf32>
    %15 = tpu.matmul %13, %14, %cst {dimension_numbers = #tpu.dot_dimension_numbers<[1], [0], [0], [1], [0, 0, 1, 1], [], []>, precision = #tpu.contract_precision<fp32>} : vector<1x120xf32>, vector<120x12xf32>, vector<1x12xf32> -> vector<1x12xf32>
    %c0_11 = arith.constant 0 : index
    %c0_12 = arith.constant 0 : index
    %16 = memref.load %arg7[%c0_11, %c0_12] : memref<1x1xf32, #tpu.memory_space<smem>>
    %17 = vector.broadcast %16 : f32 to vector<1x12xf32>
    %18 = arith.addf %15, %17 : vector<1x12xf32>
    %c0_13 = arith.constant 0 : index
    %c0_14 = arith.constant 0 : index
    %19 = vector.load %arg8[%c0_13, %c0_14] : memref<1x12xf32, #tpu.memory_space<vmem>>, vector<1x12xf32>
    tpu.vector_store %arg8[%c0_13, %c0_14], %18 {strides = array<i32>} : memref<1x12xf32, #tpu.memory_space<vmem>>, vector<1x12xf32>,
    return
  }
  func.func @transform_0(%arg0: i32) -> (i32, i32) {
    %c0_i32 = arith.constant 0 : i32
    %c0_i32_0 = arith.constant 0 : i32
    return %arg0, %c0_i32 : i32, i32
  }
  func.func @transform_1(%arg0: i32) -> (i32, i32) {
    %c0_i32 = arith.constant 0 : i32
    %c0_i32_0 = arith.constant 0 : i32
    return %arg0, %c0_i32 : i32, i32
  }
  func.func @transform_2(%arg0: i32) -> (i32, i32) {
    %c0_i32 = arith.constant 0 : i32
    %c0_i32_0 = arith.constant 0 : i32
    return %arg0, %c0_i32 : i32, i32
  }
  func.func @transform_3(%arg0: i32) -> (i32, i32) {
    %c0_i32 = arith.constant 0 : i32
    %c0_i32_0 = arith.constant 0 : i32
    return %arg0, %c0_i32 : i32, i32
  }
  func.func @transform_4(%arg0: i32) -> (i32, i32) {
    %c0_i32 = arith.constant 0 : i32
    %c0_i32_0 = arith.constant 0 : i32
    %c0_i32_1 = arith.constant 0 : i32
    return %c0_i32, %c0_i32_0 : i32, i32
  }
  func.func @transform_5(%arg0: i32) -> (i32, i32) {
    %c0_i32 = arith.constant 0 : i32
    %c0_i32_0 = arith.constant 0 : i32
    %c0_i32_1 = arith.constant 0 : i32
    return %c0_i32, %c0_i32_0 : i32, i32
  }
  func.func @transform_6(%arg0: i32) -> (i32, i32) {
    %c0_i32 = arith.constant 0 : i32
    %c0_i32_0 = arith.constant 0 : i32
    %c0_i32_1 = arith.constant 0 : i32
    return %c0_i32, %c0_i32_0 : i32, i32
  }
  func.func @transform_7(%arg0: i32) -> (i32, i32) {
    %c0_i32 = arith.constant 0 : i32
    %c0_i32_0 = arith.constant 0 : i32
    return %arg0, %c0_i32 : i32, i32
  }
}

</mosaic_0001>

<llo_original>
// kernel: tpu_custom_call.1
$region0: #{tpu_custom_call.1}
  #allocation0 [shape = 'u32[]', space=smem, size = 0x4, offset = 0x4, fixed_abs, tag = 'smem constant byte address 0x4 - core index']
  #allocation1 [shape = 'u32[144,128]{1,0:T(1,128)}', space=vmem, size = 0x12000, scoped, tag = 'internal scratch']
  #allocation2 [shape = 'f32[1,1]{1,0:T(1,128)S(6)}', space=smem, size = 0x200, scoped, tag = 'scoped memory for tpu_custom_call.1']
  %s0 = inlined_call_operand.vmem [shape: f32[1,120], index: 0, kind: input, shape index: {}]
  %s1 = inlined_call_operand.vmem [shape: f32[1,120], index: 1, kind: input, shape index: {}]
  %s2 = inlined_call_operand.vmem [shape: f32[1,120], index: 2, kind: input, shape index: {}]
  %s3 = inlined_call_operand.vmem [shape: f32[1,120], index: 3, kind: input, shape index: {}]
  %s4 = inlined_call_operand.vmem [shape: f32[3,120], index: 4, kind: input, shape index: {}]
  %s5 = inlined_call_operand.vmem [shape: f32[120,12], index: 5, kind: input, shape index: {}]
  %s6 = inlined_call_operand.<no memory space> [shape: f32[1,1], index: 6, kind: input, shape index: {}]
  %s7 = inlined_call_operand.hbm [shape: f32[1,12], index: 7, kind: output, shape index: {}]
  %s8 = sld [smem:[#allocation0]]
  $region38: #{tpu_custom_call.1} parent=0
    _
  %s10 = ssub.s32 1, %s8
  %s11 = scalar_select 0, %s10, %s8
  %12 = sst [smem:[#allocation2]] %s6
  $region1: #{tpu_custom_call.1} parent=0
    #allocation3 [shape = 'u8[512]{0}', space=vmem, size = 0x400, scoped, tag = 'output window, operand 0, single buffered']
    #allocation4 [shape = 's32[1]{0}', space=sflag, size = 0x4, scoped, tag = 'scoped memory for tpu_custom_call.1']
    %13 = vsyncpa [#allocation4], 0
    // Predicated region
    $region2: #{tpu_custom_call.1} parent=1 // pred_check
      _
    $region3: #{tpu_custom_call.1} parent=1 // pred_check_branch
      %15 = sbr.rel (0) target = $region5
    $region4: #{tpu_custom_call.1} parent=1 // pred_region
      _
    $region5: #{tpu_custom_call.1} parent=1 // pred_fallthru
      _
    // Predicated region
    $region6: #{tpu_custom_call.1} parent=1 // pred_check
      _
    $region7: #{tpu_custom_call.1} parent=1 // pred_check_branch
      %17 = sbr.rel (0) target = $region9
    $region8: #{tpu_custom_call.1} parent=1 // pred_region
      _
    $region9: #{tpu_custom_call.1} parent=1 // pred_fallthru
      _
    // Predicated region
    $region10: #{tpu_custom_call.1} parent=1 // pred_check
      _
    $region11: #{tpu_custom_call.1} parent=1 // pred_check_branch
      %19 = sbr.rel (0) target = $region13
    $region12: #{tpu_custom_call.1} parent=1 // pred_region
      _
    $region13: #{tpu_custom_call.1} parent=1 // pred_fallthru
      _
    // Predicated region
    $region14: #{tpu_custom_call.1} parent=1 // pred_check
      _
    $region15: #{tpu_custom_call.1} parent=1 // pred_check_branch
      %21 = sbr.rel (0) target = $region17
    $region16: #{tpu_custom_call.1} parent=1 // pred_region
      _
    $region17: #{tpu_custom_call.1} parent=1 // pred_fallthru
      _
    // Predicated region
    $region18: #{tpu_custom_call.1} parent=1 // pred_check
      _
    $region19: #{tpu_custom_call.1} parent=1 // pred_check_branch
      %23 = sbr.rel (0) target = $region21
    $region20: #{tpu_custom_call.1} parent=1 // pred_region
      _
    $region21: #{tpu_custom_call.1} parent=1 // pred_fallthru
      _
    // Predicated region
    $region22: #{tpu_custom_call.1} parent=1 // pred_check
      _
    $region23: #{tpu_custom_call.1} parent=1 // pred_check_branch
      %25 = sbr.rel (0) target = $region25
    $region24: #{tpu_custom_call.1} parent=1 // pred_region
      _
    $region25: #{tpu_custom_call.1} parent=1 // pred_fallthru
      _
    // Predicated region
    $region26: #{tpu_custom_call.1} parent=1 // pred_check
      _
    $region27: #{tpu_custom_call.1} parent=1 // pred_check_branch
      %27 = sbr.rel (0) target = $region29
    $region28: #{tpu_custom_call.1} parent=1 // pred_region
      _
    $region29: #{tpu_custom_call.1} parent=1 // pred_fallthru
      _
    %v28 = vld [vmem:[%s4] sm:$0x7]
    %v29 = vld [vmem:[%s0] sm:$0x1]
    %v30 = vld [vmem:[%s1] sm:$0x1]
    %v31 = vadd.f32 %v29, %v30
    %v32 = vmul.f32 %v31, %v28
    %v33 = vld [vmem:[%s2] sm:$0x1]
    %v36 = vunpack.c.l.s4 1966171168
    %v37 = vunpack.c.0.s8 %v36
    %v38 = vlaneseq
    %v39 = vshrl.u32 %v38, 7
    %v40 = vsub.s32 %v37, %v39
    %v41 = vrot.slane %v28, %v40
    %v42 = vcombine.high %v41, %v41
    %v44 = vunpack.c.l.s4 1966171168
    %v45 = vunpack.c.0.s8 %v44
    %v46 = vlaneseq
    %v47 = vshrl.u32 %v46, 7
    %v48 = vsub.s32 %v45, %v47
    %v49 = vrot.slane %v41, %v48
    %v51 = vunpack.c.l.s4 1966171168
    %v52 = vunpack.c.0.s8 %v51
    %v53 = vlaneseq
    %v54 = vshrl.u32 %v53, 7
    %v55 = vsub.s32 %v52, %v54
    %v56 = vrot.slane %v42, %v55
    %v58 = vmul.f32 %v33, %v56
    %v59 = vadd.f32 %v32, %v58
    %v60 = vld [vmem:[%s3] sm:$0x1]
    %v61 = vcombine.high %v49, %v49
    %v63 = vmul.f32 %v60, %v61
    %v64 = vadd.f32 %v59, %v63
    %v65 = vld [vmem:[%s5] sm:$0xff]
    %v66 = vld [vmem:[%s5 + $0x8] sm:$0xff]
    %v67 = vld [vmem:[%s5 + $0x10] sm:$0xff]
    %v68 = vld [vmem:[%s5 + $0x18] sm:$0xff]
    %v69 = vld [vmem:[%s5 + $0x20] sm:$0xff]
    %v70 = vld [vmem:[%s5 + $0x28] sm:$0xff]
    %v71 = vld [vmem:[%s5 + $0x30] sm:$0xff]
    %v72 = vld [vmem:[%s5 + $0x38] sm:$0xff]
    %v73 = vld [vmem:[%s5 + $0x40] sm:$0xff]
    %v74 = vld [vmem:[%s5 + $0x48] sm:$0xff]
    %v75 = vld [vmem:[%s5 + $0x50] sm:$0xff]
    %v76 = vld [vmem:[%s5 + $0x58] sm:$0xff]
    %v77 = vld [vmem:[%s5 + $0x60] sm:$0xff]
    %v78 = vld [vmem:[%s5 + $0x68] sm:$0xff]
    %v79 = vld [vmem:[%s5 + $0x70] sm:$0xff]
    %s80 = sld [smem:[#allocation2]]
    %v81 = vstv %s80
    %vm82 = vcmask 982016
    %v84 = vsel %vm82, %v64, 0
    %86 = vmatprep.subr.mxu0 0.0
    %87 = vmatpush1.msra.mxu0 0.0
    %88 = vmatprep.subr.mxu0 0.0
    %v89 = vand.u32 %v79, 4294901760
    %90 = vmatpush1.msra.mxu0 %v89
    %91 = vmatprep.subr.mxu0 0.0
    %v92 = vand.u32 %v78, 4294901760
    %93 = vmatpush1.msra.mxu0 %v92
    %94 = vmatprep.subr.mxu0 0.0
    %v95 = vand.u32 %v77, 4294901760
    %96 = vmatpush1.msra.mxu0 %v95
    %97 = vmatprep.subr.mxu0 0.0
    %v98 = vand.u32 %v76, 4294901760
    %99 = vmatpush1.msra.mxu0 %v98
    %100 = vmatprep.subr.mxu0 0.0
    %v101 = vand.u32 %v75, 4294901760
    %102 = vmatpush1.msra.mxu0 %v101
    %103 = vmatprep.subr.mxu0 0.0
    %v104 = vand.u32 %v74, 4294901760
    %105 = vmatpush1.msra.mxu0 %v104
    %106 = vmatprep.subr.mxu0 0.0
    %v107 = vand.u32 %v73, 4294901760
    %108 = vmatpush1.msra.mxu0 %v107
    %109 = vmatprep.subr.mxu0 0.0
    %v110 = vand.u32 %v72, 4294901760
    %111 = vmatpush1.msra.mxu0 %v110
    %112 = vmatprep.subr.mxu0 0.0
    %v113 = vand.u32 %v71, 4294901760
    %114 = vmatpush1.msra.mxu0 %v113
    %115 = vmatprep.subr.mxu0 0.0
    %v116 = vand.u32 %v70, 4294901760
    %117 = vmatpush1.msra.mxu0 %v116
    %118 = vmatprep.subr.mxu0 0.0
    %v119 = vand.u32 %v69, 4294901760
    %120 = vmatpush1.msra.mxu0 %v119
    %121 = vmatprep.subr.mxu0 0.0
    %v122 = vand.u32 %v68, 4294901760
    %123 = vmatpush1.msra.mxu0 %v122
    %124 = vmatprep.subr.mxu0 0.0
    %v125 = vand.u32 %v67, 4294901760
    %126 = vmatpush1.msra.mxu0 %v125
    %127 = vmatprep.subr.mxu0 0.0
    %v128 = vand.u32 %v66, 4294901760
    %129 = vmatpush1.msra.mxu0 %v128
    %130 = vmatprep.subr.mxu0 0.0
    %v131 = vand.u32 %v65, 4294901760
    %132 = vmatpush1.msra.mxu0 %v131
    %133 = vmatprep.subr.mxu0 0.0
    %134 = vmatpush2.msra.mxu0 0.0
    %135 = vmatprep.subr.mxu0 0.0
    %136 = vmatpush2.msra.mxu0 0.0
    %137 = vmatprep.subr.mxu0 0.0
    %138 = vmatpush2.msra.mxu0 0.0
    %139 = vmatprep.subr.mxu0 0.0
    %140 = vmatpush2.msra.mxu0 0.0
    %141 = vmatprep.subr.mxu0 0.0
    %142 = vmatpush2.msra.mxu0 0.0
    %143 = vmatprep.subr.mxu0 0.0
    %144 = vmatpush2.msra.mxu0 0.0
    %145 = vmatprep.subr.mxu0 0.0
    %146 = vmatpush2.msra.mxu0 0.0
    %147 = vmatprep.subr.mxu0 0.0
    %148 = vmatpush2.msra.mxu0 0.0
    %149 = vmatprep.subr.mxu0 0.0
    %150 = vmatpush2.msra.mxu0 0.0
    %151 = vmatprep.subr.mxu0 0.0
    %152 = vmatpush2.msra.mxu0 0.0
    %153 = vmatprep.subr.mxu0 0.0
    %154 = vmatpush2.msra.mxu0 0.0
    %155 = vmatprep.subr.mxu0 0.0
    %156 = vmatpush2.msra.mxu0 0.0
    %157 = vmatprep.subr.mxu0 0.0
    %158 = vmatpush2.msra.mxu0 0.0
    %159 = vmatprep.subr.mxu0 0.0
    %160 = vmatpush2.msra.mxu0 0.0
    %161 = vmatprep.subr.mxu0 0.0
    %162 = vmatpush2.msra.mxu0 0.0
    %163 = vmatprep.subr.mxu0 0.0
    %164 = vmatpush2.msra.mxu0 0.0
    %165 = vmatprep.mubr.f32.mxu0 0.0
    %v166 = vand.u32 %v84, 4294901760
    %v167 = vsub.f32 %v84, %v166
    %v168 = vand.u32 %v167, 4294901760
    %v169 = vsub.f32 %v167, %v168
    %v170 = vand.u32 %v169, 4294901760
    %171 = vmatmul.mubr.f32.gmra.mxu0 %v170
    %v172 = vpop.f32.mrf.mxu0
    %v173 = vadd.f32 %v81, %v172
    %v174 = vpop.f32.mrf.mxu0
    %175 = vdwg.mxu0
    %176 = vmatprep.subr.mxu0 0.0
    %177 = vmatpush1.msra.mxu0 0.0
    %178 = vmatprep.subr.mxu0 0.0
    %v179 = vand.u32 %v79, 4294901760
    %v180 = vsub.f32 %v79, %v179
    %v181 = vand.u32 %v180, 4294901760
    %v182 = vsub.f32 %v180, %v181
    %v183 = vand.u32 %v182, 4294901760
    %184 = vmatpush1.msra.mxu0 %v183
    %185 = vmatprep.subr.mxu0 0.0
    %v186 = vand.u32 %v78, 4294901760
    %v187 = vsub.f32 %v78, %v186
    %v188 = vand.u32 %v187, 4294901760
    %v189 = vsub.f32 %v187, %v188
    %v190 = vand.u32 %v189, 4294901760
    %191 = vmatpush1.msra.mxu0 %v190
    %192 = vmatprep.subr.mxu0 0.0
    %v193 = vand.u32 %v77, 4294901760
    %v194 = vsub.f32 %v77, %v193
    %v195 = vand.u32 %v194, 4294901760
    %v196 = vsub.f32 %v194, %v195
    %v197 = vand.u32 %v196, 4294901760
    %198 = vmatpush1.msra.mxu0 %v197
    %199 = vmatprep.subr.mxu0 0.0
    %v200 = vand.u32 %v76, 4294901760
    %v201 = vsub.f32 %v76, %v200
    %v202 = vand.u32 %v201, 4294901760
    %v203 = vsub.f32 %v201, %v202
    %v204 = vand.u32 %v203, 4294901760
    %205 = vmatpush1.msra.mxu0 %v204
    %206 = vmatprep.subr.mxu0 0.0
    %v207 = vand.u32 %v75, 4294901760
    %v208 = vsub.f32 %v75, %v207
    %v209 = vand.u32 %v208, 4294901760
    %v210 = vsub.f32 %v208, %v209
    %v211 = vand.u32 %v210, 4294901760
    %212 = vmatpush1.msra.mxu0 %v211
    %213 = vmatprep.subr.mxu0 0.0
    %v214 = vand.u32 %v74, 4294901760
    %v215 = vsub.f32 %v74, %v214
    %v216 = vand.u32 %v215, 4294901760
    %v217 = vsub.f32 %v215, %v216
    %v218 = vand.u32 %v217, 4294901760
    %219 = vmatpush1.msra.mxu0 %v218
    %220 = vmatprep.subr.mxu0 0.0
    %v221 = vand.u32 %v73, 4294901760
    %v222 = vsub.f32 %v73, %v221
    %v223 = vand.u32 %v222, 4294901760
    %v224 = vsub.f32 %v222, %v223
    %v225 = vand.u32 %v224, 4294901760
    %226 = vmatpush1.msra.mxu0 %v225
    %227 = vmatprep.subr.mxu0 0.0
    %v228 = vand.u32 %v72, 4294901760
    %v229 = vsub.f32 %v72, %v228
    %v230 = vand.u32 %v229, 4294901760
    %v231 = vsub.f32 %v229, %v230
    %v232 = vand.u32 %v231, 4294901760
    %233 = vmatpush1.msra.mxu0 %v232
    %234 = vmatprep.subr.mxu0 0.0
    %v235 = vand.u32 %v71, 4294901760
    %v236 = vsub.f32 %v71, %v235
    %v237 = vand.u32 %v236, 4294901760
    %v238 = vsub.f32 %v236, %v237
    %v239 = vand.u32 %v238, 4294901760
    %240 = vmatpush1.msra.mxu0 %v239
    %241 = vmatprep.subr.mxu0 0.0
    %v242 = vand.u32 %v70, 4294901760
    %v243 = vsub.f32 %v70, %v242
    %v244 = vand.u32 %v243, 4294901760
    %v245 = vsub.f32 %v243, %v244
    %v246 = vand.u32 %v245, 4294901760
    %247 = vmatpush1.msra.mxu0 %v246
    %248 = vmatprep.subr.mxu0 0.0
    %v249 = vand.u32 %v69, 4294901760
    %v250 = vsub.f32 %v69, %v249
    %v251 = vand.u32 %v250, 4294901760
    %v252 = vsub.f32 %v250, %v251
    %v253 = vand.u32 %v252, 4294901760
    %254 = vmatpush1.msra.mxu0 %v253
    %255 = vmatprep.subr.mxu0 0.0
    %v256 = vand.u32 %v68, 4294901760
    %v257 = vsub.f32 %v68, %v256
    %v258 = vand.u32 %v257, 4294901760
    %v259 = vsub.f32 %v257, %v258
    %v260 = vand.u32 %v259, 4294901760
    %261 = vmatpush1.msra.mxu0 %v260
    %262 = vmatprep.subr.mxu0 0.0
    %v263 = vand.u32 %v67, 4294901760
    %v264 = vsub.f32 %v67, %v263
    %v265 = vand.u32 %v264, 4294901760
    %v266 = vsub.f32 %v264, %v265
    %v267 = vand.u32 %v266, 4294901760
    %268 = vmatpush1.msra.mxu0 %v267
    %269 = vmatprep.subr.mxu0 0.0
    %v270 = vand.u32 %v66, 4294901760
    %v271 = vsub.f32 %v66, %v270
    %v272 = vand.u32 %v271, 4294901760
    %v273 = vsub.f32 %v271, %v272
    %v274 = vand.u32 %v273, 4294901760
    %275 = vmatpush1.msra.mxu0 %v274
    %276 = vmatprep.subr.mxu0 0.0
    %v277 = vand.u32 %v65, 4294901760
    %v278 = vsub.f32 %v65, %v277
    %v279 = vand.u32 %v278, 4294901760
    %v280 = vsub.f32 %v278, %v279
    %v281 = vand.u32 %v280, 4294901760
    %282 = vmatpush1.msra.mxu0 %v281
    %283 = vmatprep.subr.mxu0 0.0
    %284 = vmatpush2.msra.mxu0 0.0
    %285 = vmatprep.subr.mxu0 0.0
    %286 = vmatpush2.msra.mxu0 0.0
    %287 = vmatprep.subr.mxu0 0.0
    %288 = vmatpush2.msra.mxu0 0.0
    %289 = vmatprep.subr.mxu0 0.0
    %290 = vmatpush2.msra.mxu0 0.0
    %291 = vmatprep.subr.mxu0 0.0
    %292 = vmatpush2.msra.mxu0 0.0
    %293 = vmatprep.subr.mxu0 0.0
    %294 = vmatpush2.msra.mxu0 0.0
    %295 = vmatprep.subr.mxu0 0.0
    %296 = vmatpush2.msra.mxu0 0.0
    %297 = vmatprep.subr.mxu0 0.0
    %298 = vmatpush2.msra.mxu0 0.0
    %299 = vmatprep.subr.mxu0 0.0
    %300 = vmatpush2.msra.mxu0 0.0
    %301 = vmatprep.subr.mxu0 0.0
    %302 = vmatpush2.msra.mxu0 0.0
    %303 = vmatprep.subr.mxu0 0.0
    %304 = vmatpush2.msra.mxu0 0.0
    %305 = vmatprep.subr.mxu0 0.0
    %306 = vmatpush2.msra.mxu0 0.0
    %307 = vmatprep.subr.mxu0 0.0
    %308 = vmatpush2.msra.mxu0 0.0
    %309 = vmatprep.subr.mxu0 0.0
    %310 = vmatpush2.msra.mxu0 0.0
    %311 = vmatprep.subr.mxu0 0.0
    %312 = vmatpush2.msra.mxu0 0.0
    %313 = vmatprep.subr.mxu0 0.0
    %314 = vmatpush2.msra.mxu0 0.0
    %315 = vmatprep.mubr.f32.mxu0 0.0
    %v316 = vand.u32 %v84, 4294901760
    %317 = vmatmul.mubr.f32.gmra.mxu0 %v316
    %v318 = vpop.f32.mrf.mxu0
    %v319 = vadd.f32 %v173, %v318
    %v320 = vpop.f32.mrf.mxu0
    %321 = vdwg.mxu0
    %322 = vmatprep.subr.mxu0 0.0
    %323 = vmatpush1.msra.mxu0 0.0
    %324 = vmatprep.subr.mxu0 0.0
    %v325 = vand.u32 %v79, 4294901760
    %v326 = vsub.f32 %v79, %v325
    %327 = vmatpush1.msra.mxu0 %v326
    %328 = vmatprep.subr.mxu0 0.0
    %v329 = vand.u32 %v78, 4294901760
    %v330 = vsub.f32 %v78, %v329
    %331 = vmatpush1.msra.mxu0 %v330
    %332 = vmatprep.subr.mxu0 0.0
    %v333 = vand.u32 %v77, 4294901760
    %v334 = vsub.f32 %v77, %v333
    %335 = vmatpush1.msra.mxu0 %v334
    %336 = vmatprep.subr.mxu0 0.0
    %v337 = vand.u32 %v76, 4294901760
    %v338 = vsub.f32 %v76, %v337
    %339 = vmatpush1.msra.mxu0 %v338
    %340 = vmatprep.subr.mxu0 0.0
    %v341 = vand.u32 %v75, 4294901760
    %v342 = vsub.f32 %v75, %v341
    %343 = vmatpush1.msra.mxu0 %v342
    %344 = vmatprep.subr.mxu0 0.0
    %v345 = vand.u32 %v74, 4294901760
    %v346 = vsub.f32 %v74, %v345
    %347 = vmatpush1.msra.mxu0 %v346
    %348 = vmatprep.subr.mxu0 0.0
    %v349 = vand.u32 %v73, 4294901760
    %v350 = vsub.f32 %v73, %v349
    %351 = vmatpush1.msra.mxu0 %v350
    %352 = vmatprep.subr.mxu0 0.0
    %v353 = vand.u32 %v72, 4294901760
    %v354 = vsub.f32 %v72, %v353
    %355 = vmatpush1.msra.mxu0 %v354
    %356 = vmatprep.subr.mxu0 0.0
    %v357 = vand.u32 %v71, 4294901760
    %v358 = vsub.f32 %v71, %v357
    %359 = vmatpush1.msra.mxu0 %v358
    %360 = vmatprep.subr.mxu0 0.0
    %v361 = vand.u32 %v70, 4294901760
    %v362 = vsub.f32 %v70, %v361
    %363 = vmatpush1.msra.mxu0 %v362
    %364 = vmatprep.subr.mxu0 0.0
    %v365 = vand.u32 %v69, 4294901760
    %v366 = vsub.f32 %v69, %v365
    %367 = vmatpush1.msra.mxu0 %v366
    %368 = vmatprep.subr.mxu0 0.0
    %v369 = vand.u32 %v68, 4294901760
    %v370 = vsub.f32 %v68, %v369
    %371 = vmatpush1.msra.mxu0 %v370
    %372 = vmatprep.subr.mxu0 0.0
    %v373 = vand.u32 %v67, 4294901760
    %v374 = vsub.f32 %v67, %v373
    %375 = vmatpush1.msra.mxu0 %v374
    %376 = vmatprep.subr.mxu0 0.0
    %v377 = vand.u32 %v66, 4294901760
    %v378 = vsub.f32 %v66, %v377
    %379 = vmatpush1.msra.mxu0 %v378
    %380 = vmatprep.subr.mxu0 0.0
    %v381 = vand.u32 %v65, 4294901760
    %v382 = vsub.f32 %v65, %v381
    %383 = vmatpush1.msra.mxu0 %v382
    %384 = vmatprep.subr.mxu0 0.0
    %385 = vmatpush2.msra.mxu0 0.0
    %386 = vmatprep.subr.mxu0 0.0
    %387 = vmatpush2.msra.mxu0 0.0
    %388 = vmatprep.subr.mxu0 0.0
    %389 = vmatpush2.msra.mxu0 0.0
    %390 = vmatprep.subr.mxu0 0.0
    %391 = vmatpush2.msra.mxu0 0.0
    %392 = vmatprep.subr.mxu0 0.0
    %393 = vmatpush2.msra.mxu0 0.0
    %394 = vmatprep.subr.mxu0 0.0
    %395 = vmatpush2.msra.mxu0 0.0
    %396 = vmatprep.subr.mxu0 0.0
    %397 = vmatpush2.msra.mxu0 0.0
    %398 = vmatprep.subr.mxu0 0.0
    %399 = vmatpush2.msra.mxu0 0.0
    %400 = vmatprep.subr.mxu0 0.0
    %401 = vmatpush2.msra.mxu0 0.0
    %402 = vmatprep.subr.mxu0 0.0
    %403 = vmatpush2.msra.mxu0 0.0
    %404 = vmatprep.subr.mxu0 0.0
    %405 = vmatpush2.msra.mxu0 0.0
    %406 = vmatprep.subr.mxu0 0.0
    %407 = vmatpush2.msra.mxu0 0.0
    %408 = vmatprep.subr.mxu0 0.0
    %409 = vmatpush2.msra.mxu0 0.0
    %410 = vmatprep.subr.mxu0 0.0
    %411 = vmatpush2.msra.mxu0 0.0
    %412 = vmatprep.subr.mxu0 0.0
    %413 = vmatpush2.msra.mxu0 0.0
    %414 = vmatprep.subr.mxu0 0.0
    %415 = vmatpush2.msra.mxu0 0.0
    %416 = vmatprep.mubr.f32.mxu0 0.0
    %v417 = vand.u32 %v84, 4294901760
    %v418 = vsub.f32 %v84, %v417
    %419 = vmatmul.mubr.f32.gmra.mxu0 %v418
    %v420 = vpop.f32.mrf.mxu0
    %v421 = vadd.f32 %v319, %v420
    %v422 = vpop.f32.mrf.mxu0
    %423 = vdwg.mxu0
    %424 = vmatprep.subr.mxu0 0.0
    %425 = vmatpush1.msra.mxu0 0.0
    %426 = vmatprep.subr.mxu0 0.0
    %v427 = vand.u32 %v79, 4294901760
    %428 = vmatpush1.msra.mxu0 %v427
    %429 = vmatprep.subr.mxu0 0.0
    %v430 = vand.u32 %v78, 4294901760
    %431 = vmatpush1.msra.mxu0 %v430
    %432 = vmatprep.subr.mxu0 0.0
    %v433 = vand.u32 %v77, 4294901760
    %434 = vmatpush1.msra.mxu0 %v433
    %435 = vmatprep.subr.mxu0 0.0
    %v436 = vand.u32 %v76, 4294901760
    %437 = vmatpush1.msra.mxu0 %v436
    %438 = vmatprep.subr.mxu0 0.0
    %v439 = vand.u32 %v75, 4294901760
    %440 = vmatpush1.msra.mxu0 %v439
    %441 = vmatprep.subr.mxu0 0.0
    %v442 = vand.u32 %v74, 4294901760
    %443 = vmatpush1.msra.mxu0 %v442
    %444 = vmatprep.subr.mxu0 0.0
    %v445 = vand.u32 %v73, 4294901760
    %446 = vmatpush1.msra.mxu0 %v445
    %447 = vmatprep.subr.mxu0 0.0
    %v448 = vand.u32 %v72, 4294901760
    %449 = vmatpush1.msra.mxu0 %v448
    %450 = vmatprep.subr.mxu0 0.0
    %v451 = vand.u32 %v71, 4294901760
    %452 = vmatpush1.msra.mxu0 %v451
    %453 = vmatprep.subr.mxu0 0.0
    %v454 = vand.u32 %v70, 4294901760
    %455 = vmatpush1.msra.mxu0 %v454
    %456 = vmatprep.subr.mxu0 0.0
    %v457 = vand.u32 %v69, 4294901760
    %458 = vmatpush1.msra.mxu0 %v457
    %459 = vmatprep.subr.mxu0 0.0
    %v460 = vand.u32 %v68, 4294901760
    %461 = vmatpush1.msra.mxu0 %v460
    %462 = vmatprep.subr.mxu0 0.0
    %v463 = vand.u32 %v67, 4294901760
    %464 = vmatpush1.msra.mxu0 %v463
    %465 = vmatprep.subr.mxu0 0.0
    %v466 = vand.u32 %v66, 4294901760
    %467 = vmatpush1.msra.mxu0 %v466
    %468 = vmatprep.subr.mxu0 0.0
    %v469 = vand.u32 %v65, 4294901760
    %470 = vmatpush1.msra.mxu0 %v469
    %471 = vmatprep.subr.mxu0 0.0
    %472 = vmatpush2.msra.mxu0 0.0
    %473 = vmatprep.subr.mxu0 0.0
    %474 = vmatpush2.msra.mxu0 0.0
    %475 = vmatprep.subr.mxu0 0.0
    %476 = vmatpush2.msra.mxu0 0.0
    %477 = vmatprep.subr.mxu0 0.0
    %478 = vmatpush2.msra.mxu0 0.0
    %479 = vmatprep.subr.mxu0 0.0
    %480 = vmatpush2.msra.mxu0 0.0
    %481 = vmatprep.subr.mxu0 0.0
    %482 = vmatpush2.msra.mxu0 0.0
    %483 = vmatprep.subr.mxu0 0.0
    %484 = vmatpush2.msra.mxu0 0.0
    %485 = vmatprep.subr.mxu0 0.0
    %486 = vmatpush2.msra.mxu0 0.0
    %487 = vmatprep.subr.mxu0 0.0
    %488 = vmatpush2.msra.mxu0 0.0
    %489 = vmatprep.subr.mxu0 0.0
    %490 = vmatpush2.msra.mxu0 0.0
    %491 = vmatprep.subr.mxu0 0.0
    %492 = vmatpush2.msra.mxu0 0.0
    %493 = vmatprep.subr.mxu0 0.0
    %494 = vmatpush2.msra.mxu0 0.0
    %495 = vmatprep.subr.mxu0 0.0
    %496 = vmatpush2.msra.mxu0 0.0
    %497 = vmatprep.subr.mxu0 0.0
    %498 = vmatpush2.msra.mxu0 0.0
    %499 = vmatprep.subr.mxu0 0.0
    %500 = vmatpush2.msra.mxu0 0.0
    %501 = vmatprep.subr.mxu0 0.0
    %502 = vmatpush2.msra.mxu0 0.0
    %503 = vmatprep.mubr.f32.mxu0 0.0
    %v504 = vand.u32 %v84, 4294901760
    %v505 = vsub.f32 %v84, %v504
    %v506 = vand.u32 %v505, 4294901760
    %507 = vmatmul.mubr.f32.gmra.mxu0 %v506
    %v508 = vpop.f32.mrf.mxu0
    %v509 = vadd.f32 %v421, %v508
    %v510 = vpop.f32.mrf.mxu0
    %511 = vdwg.mxu0
    %512 = vmatprep.subr.mxu0 0.0
    %513 = vmatpush1.msra.mxu0 0.0
    %514 = vmatprep.subr.mxu0 0.0
    %v515 = vand.u32 %v79, 4294901760
    %v516 = vsub.f32 %v79, %v515
    %v517 = vand.u32 %v516, 4294901760
    %518 = vmatpush1.msra.mxu0 %v517
    %519 = vmatprep.subr.mxu0 0.0
    %v520 = vand.u32 %v78, 4294901760
    %v521 = vsub.f32 %v78, %v520
    %v522 = vand.u32 %v521, 4294901760
    %523 = vmatpush1.msra.mxu0 %v522
    %524 = vmatprep.subr.mxu0 0.0
    %v525 = vand.u32 %v77, 4294901760
    %v526 = vsub.f32 %v77, %v525
    %v527 = vand.u32 %v526, 4294901760
    %528 = vmatpush1.msra.mxu0 %v527
    %529 = vmatprep.subr.mxu0 0.0
    %v530 = vand.u32 %v76, 4294901760
    %v531 = vsub.f32 %v76, %v530
    %v532 = vand.u32 %v531, 4294901760
    %533 = vmatpush1.msra.mxu0 %v532
    %534 = vmatprep.subr.mxu0 0.0
    %v535 = vand.u32 %v75, 4294901760
    %v536 = vsub.f32 %v75, %v535
    %v537 = vand.u32 %v536, 4294901760
    %538 = vmatpush1.msra.mxu0 %v537
    %539 = vmatprep.subr.mxu0 0.0
    %v540 = vand.u32 %v74, 4294901760
    %v541 = vsub.f32 %v74, %v540
    %v542 = vand.u32 %v541, 4294901760
    %543 = vmatpush1.msra.mxu0 %v542
    %544 = vmatprep.subr.mxu0 0.0
    %v545 = vand.u32 %v73, 4294901760
    %v546 = vsub.f32 %v73, %v545
    %v547 = vand.u32 %v546, 4294901760
    %548 = vmatpush1.msra.mxu0 %v547
    %549 = vmatprep.subr.mxu0 0.0
    %v550 = vand.u32 %v72, 4294901760
    %v551 = vsub.f32 %v72, %v550
    %v552 = vand.u32 %v551, 4294901760
    %553 = vmatpush1.msra.mxu0 %v552
    %554 = vmatprep.subr.mxu0 0.0
    %v555 = vand.u32 %v71, 4294901760
    %v556 = vsub.f32 %v71, %v555
    %v557 = vand.u32 %v556, 4294901760
    %558 = vmatpush1.msra.mxu0 %v557
    %559 = vmatprep.subr.mxu0 0.0
    %v560 = vand.u32 %v70, 4294901760
    %v561 = vsub.f32 %v70, %v560
    %v562 = vand.u32 %v561, 4294901760
    %563 = vmatpush1.msra.mxu0 %v562
    %564 = vmatprep.subr.mxu0 0.0
    %v565 = vand.u32 %v69, 4294901760
    %v566 = vsub.f32 %v69, %v565
    %v567 = vand.u32 %v566, 4294901760
    %568 = vmatpush1.msra.mxu0 %v567
    %569 = vmatprep.subr.mxu0 0.0
    %v570 = vand.u32 %v68, 4294901760
    %v571 = vsub.f32 %v68, %v570
    %v572 = vand.u32 %v571, 4294901760
    %573 = vmatpush1.msra.mxu0 %v572
    %574 = vmatprep.subr.mxu0 0.0
    %v575 = vand.u32 %v67, 4294901760
    %v576 = vsub.f32 %v67, %v575
    %v577 = vand.u32 %v576, 4294901760
    %578 = vmatpush1.msra.mxu0 %v577
    %579 = vmatprep.subr.mxu0 0.0
    %v580 = vand.u32 %v66, 4294901760
    %v581 = vsub.f32 %v66, %v580
    %v582 = vand.u32 %v581, 4294901760
    %583 = vmatpush1.msra.mxu0 %v582
    %584 = vmatprep.subr.mxu0 0.0
    %v585 = vand.u32 %v65, 4294901760
    %v586 = vsub.f32 %v65, %v585
    %v587 = vand.u32 %v586, 4294901760
    %588 = vmatpush1.msra.mxu0 %v587
    %589 = vmatprep.subr.mxu0 0.0
    %590 = vmatpush2.msra.mxu0 0.0
    %591 = vmatprep.subr.mxu0 0.0
    %592 = vmatpush2.msra.mxu0 0.0
    %593 = vmatprep.subr.mxu0 0.0
    %594 = vmatpush2.msra.mxu0 0.0
    %595 = vmatprep.subr.mxu0 0.0
    %596 = vmatpush2.msra.mxu0 0.0
    %597 = vmatprep.subr.mxu0 0.0
    %598 = vmatpush2.msra.mxu0 0.0
    %599 = vmatprep.subr.mxu0 0.0
    %600 = vmatpush2.msra.mxu0 0.0
    %601 = vmatprep.subr.mxu0 0.0
    %602 = vmatpush2.msra.mxu0 0.0
    %603 = vmatprep.subr.mxu0 0.0
    %604 = vmatpush2.msra.mxu0 0.0
    %605 = vmatprep.subr.mxu0 0.0
    %606 = vmatpush2.msra.mxu0 0.0
    %607 = vmatprep.subr.mxu0 0.0
    %608 = vmatpush2.msra.mxu0 0.0
    %609 = vmatprep.subr.mxu0 0.0
    %610 = vmatpush2.msra.mxu0 0.0
    %611 = vmatprep.subr.mxu0 0.0
    %612 = vmatpush2.msra.mxu0 0.0
    %613 = vmatprep.subr.mxu0 0.0
    %614 = vmatpush2.msra.mxu0 0.0
    %615 = vmatprep.subr.mxu0 0.0
    %616 = vmatpush2.msra.mxu0 0.0
    %617 = vmatprep.subr.mxu0 0.0
    %618 = vmatpush2.msra.mxu0 0.0
    %619 = vmatprep.subr.mxu0 0.0
    %620 = vmatpush2.msra.mxu0 0.0
    %621 = vmatprep.mubr.f32.mxu0 0.0
    %v622 = vand.u32 %v84, 4294901760
    %623 = vmatmul.mubr.f32.gmra.mxu0 %v622
    %v624 = vpop.f32.mrf.mxu0
    %v625 = vadd.f32 %v509, %v624
    %v626 = vpop.f32.mrf.mxu0
    %627 = vdwg.mxu0
    %628 = vmatprep.subr.mxu0 0.0
    %629 = vmatpush1.msra.mxu0 0.0
    %630 = vmatprep.subr.mxu0 0.0
    %v631 = vand.u32 %v79, 4294901760
    %632 = vmatpush1.msra.mxu0 %v631
    %633 = vmatprep.subr.mxu0 0.0
    %v634 = vand.u32 %v78, 4294901760
    %635 = vmatpush1.msra.mxu0 %v634
    %636 = vmatprep.subr.mxu0 0.0
    %v637 = vand.u32 %v77, 4294901760
    %638 = vmatpush1.msra.mxu0 %v637
    %639 = vmatprep.subr.mxu0 0.0
    %v640 = vand.u32 %v76, 4294901760
    %641 = vmatpush1.msra.mxu0 %v640
    %642 = vmatprep.subr.mxu0 0.0
    %v643 = vand.u32 %v75, 4294901760
    %644 = vmatpush1.msra.mxu0 %v643
    %645 = vmatprep.subr.mxu0 0.0
    %v646 = vand.u32 %v74, 4294901760
    %647 = vmatpush1.msra.mxu0 %v646
    %648 = vmatprep.subr.mxu0 0.0
    %v649 = vand.u32 %v73, 4294901760
    %650 = vmatpush1.msra.mxu0 %v649
    %651 = vmatprep.subr.mxu0 0.0
    %v652 = vand.u32 %v72, 4294901760
    %653 = vmatpush1.msra.mxu0 %v652
    %654 = vmatprep.subr.mxu0 0.0
    %v655 = vand.u32 %v71, 4294901760
    %656 = vmatpush1.msra.mxu0 %v655
    %657 = vmatprep.subr.mxu0 0.0
    %v658 = vand.u32 %v70, 4294901760
    %659 = vmatpush1.msra.mxu0 %v658
    %660 = vmatprep.subr.mxu0 0.0
    %v661 = vand.u32 %v69, 4294901760
    %662 = vmatpush1.msra.mxu0 %v661
    %663 = vmatprep.subr.mxu0 0.0
    %v664 = vand.u32 %v68, 4294901760
    %665 = vmatpush1.msra.mxu0 %v664
    %666 = vmatprep.subr.mxu0 0.0
    %v667 = vand.u32 %v67, 4294901760
    %668 = vmatpush1.msra.mxu0 %v667
    %669 = vmatprep.subr.mxu0 0.0
    %v670 = vand.u32 %v66, 4294901760
    %671 = vmatpush1.msra.mxu0 %v670
    %672 = vmatprep.subr.mxu0 0.0
    %v673 = vand.u32 %v65, 4294901760
    %674 = vmatpush1.msra.mxu0 %v673
    %675 = vmatprep.subr.mxu0 0.0
    %676 = vmatpush2.msra.mxu0 0.0
    %677 = vmatprep.subr.mxu0 0.0
    %678 = vmatpush2.msra.mxu0 0.0
    %679 = vmatprep.subr.mxu0 0.0
    %680 = vmatpush2.msra.mxu0 0.0
    %681 = vmatprep.subr.mxu0 0.0
    %682 = vmatpush2.msra.mxu0 0.0
    %683 = vmatprep.subr.mxu0 0.0
    %684 = vmatpush2.msra.mxu0 0.0
    %685 = vmatprep.subr.mxu0 0.0
    %686 = vmatpush2.msra.mxu0 0.0
    %687 = vmatprep.subr.mxu0 0.0
    %688 = vmatpush2.msra.mxu0 0.0
    %689 = vmatprep.subr.mxu0 0.0
    %690 = vmatpush2.msra.mxu0 0.0
    %691 = vmatprep.subr.mxu0 0.0
    %692 = vmatpush2.msra.mxu0 0.0
    %693 = vmatprep.subr.mxu0 0.0
    %694 = vmatpush2.msra.mxu0 0.0
    %695 = vmatprep.subr.mxu0 0.0
    %696 = vmatpush2.msra.mxu0 0.0
    %697 = vmatprep.subr.mxu0 0.0
    %698 = vmatpush2.msra.mxu0 0.0
    %699 = vmatprep.subr.mxu0 0.0
    %700 = vmatpush2.msra.mxu0 0.0
    %701 = vmatprep.subr.mxu0 0.0
    %702 = vmatpush2.msra.mxu0 0.0
    %703 = vmatprep.subr.mxu0 0.0
    %704 = vmatpush2.msra.mxu0 0.0
    %705 = vmatprep.subr.mxu0 0.0
    %706 = vmatpush2.msra.mxu0 0.0
    %707 = vmatprep.mubr.f32.mxu0 0.0
    %v708 = vand.u32 %v84, 4294901760
    %709 = vmatmul.mubr.f32.gmra.mxu0 %v708
    %v710 = vpop.f32.mrf.mxu0
    %v711 = vadd.f32 %v625, %v710
    %v712 = vpop.f32.mrf.mxu0
    %713 = vdwg.mxu0
    %vm714 = vcmask 90112
    %715 = vst.msk [vmem:[#allocation3] sm:$0x1] %vm714, %v711
    // Predicated region
    $region30: #{tpu_custom_call.1} parent=1 // pred_check
      _
    $region31: #{tpu_custom_call.1} parent=1 // pred_check_branch
      %717 = sbr.rel (0) target = $region33
    $region32: #{tpu_custom_call.1} parent=1 // pred_region
      %s719 = ssub.s32 16, 16
      %720 = vsyncadd [#allocation4], %s719
      %s722 = sshll.u32 [#allocation3], 4
      %s723 = int_to_ptr.vmem [resolvable:$true] %s722
      %725 = dma.vmem_to_hbm [thread:$0]  %s723, 16, %s7, [#allocation4]
    $region33: #{tpu_custom_call.1} parent=1 // pred_fallthru
      _
    // Predicated region
    $region34: #{tpu_custom_call.1} parent=1 // pred_check
      _
    $region35: #{tpu_custom_call.1} parent=1 // pred_check_branch
      %727 = sbr.rel (0) target = $region37
    $region36: #{tpu_custom_call.1} parent=1 // pred_region
      %728 = dma.done [#allocation4], 16
    $region37: #{tpu_custom_call.1} parent=1 // pred_fallthru
      _
    %729 = vsyncpa [#allocation4], 1

</llo_original>
